<compile_context>
chip_gen: v7x
topology: tpu7x:2x2x1
jax: 0.10.0
libtpu: 0.0.40
codegen_flags: <defaults>
</compile_context>

<pallas_src>
import functools
import math

import jax
import jax.numpy as jnp
from jax.experimental import pallas as pl
from jax.experimental.pallas import tpu as pltpu

BN_EPS = 1e-5
POOL_TILE = 1024                   # spatial tile for the image-pool reduction
VMEM_LIMIT = 48 * 1024 * 1024      # explicit scoped-VMEM budget (fits all gens)

_TAPS3 = tuple((ky, kx) for ky in range(3) for kx in range(3))


def _cparams(dims):
    return pltpu.CompilerParams(dimension_semantics=dims,
                                vmem_limit_bytes=VMEM_LIMIT)


# ----------------------------------------------------------------------------
# In-kernel helpers: shifted-window tap reads straight from VMEM (no HBM im2col)
# ----------------------------------------------------------------------------
def _valid(hh, ww, dy, dx, hf, wf):
    """(Mi,1) bool: shifted source pixel (h+dy, w+dx) lies inside the plane."""
    return (hh + dy >= 0) & (hh + dy < hf) & (ww + dx >= 0) & (ww + dx < wf)


def _shift_mask(z, hh, ww, dy, dx, hf, wf):
    """z: (hf*wf, C) plane flattened row-major.  Returns zs with
    zs[p] = z[p + dy*wf + dx] when the shifted pixel is in-bounds, else 0 -
    identical to reading a zero-padded NHWC plane at offset (dy, dx)."""
    if dy == 0 and dx == 0:
        return z
    s = dy * wf + dx
    zs = jnp.concatenate([z[s:], z[:s]], axis=0) if s != 0 else z
    return jnp.where(_valid(hh, ww, dy, dx, hf, wf), zs, jnp.zeros_like(zs))


# ----------------------------------------------------------------------------
# Pallas kernels
# ----------------------------------------------------------------------------
def _pool_conv_kernel(x_ref, w_ref, b_ref, o_ref, acc_ref, *, ts, s_total):
    """Fused AdaptiveAvgPool2d(1) + 1x1 conv: masked mean over spatial row tiles,
    then pooled @ W + b in the epilogue."""
    s = pl.program_id(1)

    @pl.when(s == 0)
    def _():
        acc_ref[...] = jnp.zeros_like(acc_ref)

    rows = s * ts + jax.lax.broadcasted_iota(jnp.int32, (ts, 1), 0)
    xb = jnp.where(rows < s_total, x_ref[...].astype(jnp.float32), 0.0)
    acc_ref[...] += jnp.sum(xb, axis=0, keepdims=True)

    @pl.when(s == pl.num_programs(1) - 1)
    def _():
        pooled = (acc_ref[...] * (1.0 / s_total)).astype(w_ref.dtype)
        o_ref[...] = (jnp.dot(pooled, w_ref[...],
                              preferred_element_type=jnp.float32) + b_ref[...])


def _aspp_kernel(x_ref, rc_ref, w1_ref, w3_ref, b_ref, y_ref, st_ref,
                 *, dil3, hf, wf):
    """All ASPP convs for one image: 1x1 conv + len(dil3) dilated 3x3 convs.
    Taps are shifted/masked in VMEM; weights are VMEM-resident (constant index);
    emits raw bf16 conv outputs + per-image (sum, sumsq) BN partials."""
    mi = hf * wf
    cmid = w1_ref.shape[-1]
    x = x_ref[...]                                        # (mi, Cin) bf16
    hh = rc_ref[0]                                        # (mi, 1) int32
    ww = rc_ref[1]

    accs = [jnp.dot(x, w1_ref[...], preferred_element_type=jnp.float32)
            + b_ref[0]]                                   # branch 0: 1x1 conv
    for bi, d in enumerate(dil3):                         # 3x3 convs, padding = d
        acc = jnp.zeros((mi, cmid), jnp.float32) + b_ref[bi + 1]
        for t, (ky, kx) in enumerate(_TAPS3):
            dy, dx = (ky - 1) * d, (kx - 1) * d
            if abs(dy) >= hf or abs(dx) >= wf:            # tap reads only padding
                continue
            xs = _shift_mask(x, hh, ww, dy, dx, hf, wf)
            acc = acc + jnp.dot(xs, w3_ref[bi, t],
                                preferred_element_type=jnp.float32)
        accs.append(acc)

    for bi, acc in enumerate(accs):
        y_ref[bi] = acc.astype(y_ref.dtype)               # bf16 write (once)
        st_ref[bi] = jnp.concatenate(
            [jnp.sum(acc, axis=0, keepdims=True),
             jnp.sum(acc * acc, axis=0, keepdims=True)], axis=0)


def _bottleneck_fused_kernel(y_ref, rc_ref, sc_ref, sh_ref, pc_ref, wb_ref,
                             bb_ref, fw_ref, fb_ref, a2_ref, o_ref, *, hf, wf):
    """Per image: bottleneck 3x3 conv (pad=1) over the 5x256-channel concat with
    BN+ReLU fused into the tap loads, the image-pool branch folded in as masked
    per-tap constants, then the final 1x1 conv and the bilinear upsample
    (one (h*w, Hf*Wf) matmul) in the epilogue."""
    mi = hf * wf
    cmid = bb_ref.shape[-1]
    nbr = wb_ref.shape[0]
    hh = rc_ref[0]
    ww = rc_ref[1]

    # BN (batch stats) + ReLU fused here instead of a separate full-M pass.
    z = [jnp.maximum(y_ref[b].astype(jnp.float32) * sc_ref[b] + sh_ref[b],
                     0.0).astype(jnp.bfloat16) for b in range(nbr)]
    pc = pc_ref[...]                                      # (9, cmid) pool taps

    acc = jnp.zeros((mi, cmid), jnp.float32) + bb_ref[...]
    for t, (ky, kx) in enumerate(_TAPS3):
        dy, dx = ky - 1, kx - 1
        if dy == 0 and dx == 0:                           # image-pool branch
            acc = acc + pc[t:t + 1, :]
        else:
            acc = acc + jnp.where(_valid(hh, ww, dy, dx, hf, wf),
                                  pc[t:t + 1, :], 0.0)
        for b in range(nbr):                              # 4 ASPP branches
            zs = _shift_mask(z[b], hh, ww, dy, dx, hf, wf)
            acc = acc + jnp.dot(zs, wb_ref[b, t],
                                preferred_element_type=jnp.float32)

    # final 1x1 conv (classes padded to a dense 128-lane block) ...
    logits = (jnp.dot(acc.astype(jnp.bfloat16), fw_ref[...],
                      preferred_element_type=jnp.float32) + fb_ref[...])
    # ... then bilinear upsample as a single (h*w, mi) @ (mi, 128) matmul.
    o_ref[...] = jnp.dot(a2_ref[...], logits, preferred_element_type=jnp.float32)


# ----------------------------------------------------------------------------
# pallas_call wrappers
# ----------------------------------------------------------------------------
def image_pool_conv(x_nsc, w_kc, bias):
    """x [N, S, Cin] bf16, w [Cin, Cout] bf16, bias [1, Cout] f32 -> [N, Cout] f32."""
    N, S, Cin = x_nsc.shape
    Cout = w_kc.shape[-1]
    ts = S if S <= POOL_TILE else POOL_TILE
    n_s = pl.cdiv(S, ts)
    out = pl.pallas_call(
        functools.partial(_pool_conv_kernel, ts=ts, s_total=S),
        out_shape=jax.ShapeDtypeStruct((N, 1, Cout), jnp.float32),
        grid_spec=pltpu.PrefetchScalarGridSpec(
            num_scalar_prefetch=0,
            grid=(N, n_s),
            in_specs=[pl.BlockSpec((pl.Squeezed(), ts, Cin), lambda n, s: (n, s, 0)),
                      pl.BlockSpec((Cin, Cout), lambda n, s: (0, 0)),
                      pl.BlockSpec((1, Cout), lambda n, s: (0, 0))],
            out_specs=pl.BlockSpec((pl.Squeezed(), 1, Cout), lambda n, s: (n, 0, 0)),
            scratch_shapes=[pltpu.VMEM((1, Cin), jnp.float32)],
        ),
        compiler_params=_cparams(("parallel", "arbitrary")),
    )(x_nsc, w_kc, bias)
    return out.reshape(N, Cout)


def aspp_convs(x_nmc, rowcol, w1, w3, biases, dil3, hf, wf):
    """x [N, Mi, Cin] bf16 -> raw conv outputs [N, nbr, Mi, Cmid] bf16 and per-image
    (sum, sumsq) BN partials [N, nbr, 2, Cmid] f32."""
    N, Mi, Cin = x_nmc.shape
    Cmid = w1.shape[-1]
    nbr = biases.shape[0]
    n3 = w3.shape[0]
    return pl.pallas_call(
        functools.partial(_aspp_kernel, dil3=dil3, hf=hf, wf=wf),
        out_shape=(jax.ShapeDtypeStruct((N, nbr, Mi, Cmid), jnp.bfloat16),
                   jax.ShapeDtypeStruct((N, nbr, 2, Cmid), jnp.float32)),
        grid_spec=pltpu.PrefetchScalarGridSpec(
            num_scalar_prefetch=0,
            grid=(N,),
            in_specs=[
                pl.BlockSpec((pl.Squeezed(), Mi, Cin), lambda n: (n, 0, 0)),
                pl.BlockSpec((2, Mi, 1), lambda n: (0, 0, 0)),
                pl.BlockSpec((Cin, Cmid), lambda n: (0, 0)),
                pl.BlockSpec((n3, 9, Cin, Cmid), lambda n: (0, 0, 0, 0)),
                pl.BlockSpec((nbr, 1, Cmid), lambda n: (0, 0, 0)),
            ],
            out_specs=(
                pl.BlockSpec((pl.Squeezed(), nbr, Mi, Cmid), lambda n: (n, 0, 0, 0)),
                pl.BlockSpec((pl.Squeezed(), nbr, 2, Cmid), lambda n: (n, 0, 0, 0)),
            ),
        ),
        compiler_params=_cparams(("parallel",)),
    )(x_nmc, rowcol, w1, w3, biases)


def bottleneck_final_upsample(y_all, rowcol, scale, shift, poolc, wb, bb,
                              fw, fb, a2, hf, wf):
    """Fused bottleneck + BN/ReLU tap loads + final 1x1 conv + bilinear upsample.
    Returns [N, h*w, Cpad] f32 (Cpad = classes padded to 128 lanes)."""
    N, nbr, Mi, Cmid = y_all.shape
    Cp = fw.shape[-1]
    HW = a2.shape[0]
    return pl.pallas_call(
        functools.partial(_bottleneck_fused_kernel, hf=hf, wf=wf),
        out_shape=jax.ShapeDtypeStruct((N, HW, Cp), jnp.float32),
        grid_spec=pltpu.PrefetchScalarGridSpec(
            num_scalar_prefetch=0,
            grid=(N,),
            in_specs=[
                pl.BlockSpec((pl.Squeezed(), nbr, Mi, Cmid), lambda n: (n, 0, 0, 0)),
                pl.BlockSpec((2, Mi, 1), lambda n: (0, 0, 0)),
                pl.BlockSpec((nbr, 1, Cmid), lambda n: (0, 0, 0)),
                pl.BlockSpec((nbr, 1, Cmid), lambda n: (0, 0, 0)),
                pl.BlockSpec((pl.Squeezed(), 9, Cmid), lambda n: (n, 0, 0)),
                pl.BlockSpec((nbr, 9, Cmid, Cmid), lambda n: (0, 0, 0, 0)),
                pl.BlockSpec((1, Cmid), lambda n: (0, 0)),
                pl.BlockSpec((Cmid, Cp), lambda n: (0, 0)),
                pl.BlockSpec((1, Cp), lambda n: (0, 0)),
                pl.BlockSpec((HW, Mi), lambda n: (0, 0)),
            ],
            out_specs=pl.BlockSpec((pl.Squeezed(), HW, Cp), lambda n: (n, 0, 0)),
        ),
        compiler_params=_cparams(("parallel",)),
    )(y_all, rowcol, scale, shift, poolc, wb, bb, fw, fb, a2)


# ----------------------------------------------------------------------------
# Glue (pure JAX, tiny): weight reshaping, interpolation matrices, BN stats
# ----------------------------------------------------------------------------
def weight_to_taps(w):
    # PyTorch conv weight [Cout, Cin, KH, KW] -> [KH*KW, Cin, Cout]
    cout, cin, kh, kw = w.shape
    return jnp.transpose(w, (2, 3, 1, 0)).reshape(kh * kw, cin, cout)


def split_bottleneck_weight(w, n_branches, cin_b):
    # [Cout, B*Cin_b, 3, 3] -> per-branch tap matrices [B, 9, Cin_b, Cout]
    cout = w.shape[0]
    w5 = w.reshape(cout, n_branches, cin_b, 3, 3)
    w5 = jnp.transpose(w5, (1, 3, 4, 2, 0))               # (B, 3, 3, Cin_b, Cout)
    return w5.reshape(n_branches, 9, cin_b, cout)


def interp_matrix(out_size, in_size):
    # Bilinear interpolation matrix, align_corners=True (rows sum to 1).
    if in_size == 1:
        return jnp.ones((out_size, 1), jnp.float32)
    if out_size == 1:
        src = jnp.zeros((1,), jnp.float32)
    else:
        src = jnp.arange(out_size, dtype=jnp.float32) * (in_size - 1) / (out_size - 1)
    lo = jnp.clip(jnp.floor(src).astype(jnp.int32), 0, in_size - 2)
    frac = src - lo.astype(jnp.float32)
    rows = jnp.arange(out_size)
    a = jnp.zeros((out_size, in_size), jnp.float32)
    a = a.at[rows, lo].add(1.0 - frac)
    a = a.at[rows, lo + 1].add(frac)
    return a


def batch_norm_scale_shift(stats, m_total, gamma, beta):
    # stats: (N, nbr, 2, C) per-image partials -> per-branch scale/shift (nbr,1,C)
    sums = jnp.sum(stats, axis=0)                         # (nbr, 2, C)
    mean = sums[:, 0] / m_total
    var = jnp.maximum(sums[:, 1] / m_total - mean * mean, 0.0)
    scale = gamma * jax.lax.rsqrt(var + BN_EPS)
    shift = beta - mean * scale
    return (scale[:, None, :].astype(jnp.float32),
            shift[:, None, :].astype(jnp.float32))


# ----------------------------------------------------------------------------
# Parameters (deterministic, synthetic)
# ----------------------------------------------------------------------------
def init_params(key, dilations=(1, 6, 12, 18), in_channels=512, channels=256,
                num_classes=6):
    keys = iter(jax.random.split(key, 64))

    def conv_w(cout, cin, k):
        return jax.random.normal(next(keys), (cout, cin, k, k),
                                 jnp.float32) / math.sqrt(cin * k * k)

    def vec(c, scale=0.01):
        return jax.random.normal(next(keys), (c,), jnp.float32) * scale

    params = {
        "image_pool": (conv_w(channels, in_channels, 1), vec(channels)),
        "aspp": [],
        "bottleneck": (conv_w(channels, (len(dilations) + 1) * channels, 3),
                       vec(channels)),
        "final": (conv_w(num_classes, channels, 1), vec(num_classes)),
    }
    for d in dilations:
        k = 1 if d == 1 else 3
        params["aspp"].append(dict(
            w=conv_w(channels, in_channels, k),
            b=vec(channels),
            gamma=1.0 + vec(channels, 0.1),
            beta=vec(channels, 0.1),
        ))
    return params


# ----------------------------------------------------------------------------
# Forward pass (DeepLabv3 head)
# ----------------------------------------------------------------------------
def deeplabv3_head(x_feat_nchw, out_hw, params, dilations=(1, 6, 12, 18)):
    N, Cin, Hf, Wf = x_feat_nchw.shape
    h, w = out_hw
    Cmid = 256
    Mi = Hf * Wf
    assert dilations[0] == 1
    dil3 = tuple(dilations[1:])

    x = jnp.transpose(x_feat_nchw, (0, 2, 3, 1)).reshape(N, Mi, Cin)
    x = x.astype(jnp.bfloat16)                            # NHWC rows, bf16

    # flat-row -> (h, w) coordinates used by the in-kernel tap masks
    pidx = jnp.arange(Mi, dtype=jnp.int32)
    rowcol = jnp.stack([pidx // Wf, pidx % Wf]).reshape(2, Mi, 1)

    # -- image pool branch: AdaptiveAvgPool2d(1) + 1x1 conv (fused kernel);
    #    align_corners bilinear upsample from a 1x1 source is a constant broadcast.
    pw, pb = params["image_pool"]
    pw_kc = weight_to_taps(pw)[0].astype(jnp.bfloat16)    # (Cin, Cmid)
    pooled = image_pool_conv(x, pw_kc, pb[None])          # (N, Cmid) f32

    # -- all four ASPP convs in one kernel (x read once, weights resident,
    #    shifted/masked taps in VMEM, bf16 outputs + BN partial stats).
    w1 = weight_to_taps(params["aspp"][0]["w"])[0].astype(jnp.bfloat16)
    w3 = jnp.stack([weight_to_taps(p["w"]) for p in params["aspp"][1:]]
                   ).astype(jnp.bfloat16)                 # (3, 9, Cin, Cmid)
    b_all = jnp.stack([p["b"] for p in params["aspp"]])[:, None, :]
    y_all, stats = aspp_convs(x, rowcol, w1, w3, b_all, dil3, Hf, Wf)

    # -- train-mode BatchNorm statistics (tiny reduction, plain JAX)
    gamma = jnp.stack([p["gamma"] for p in params["aspp"]])
    beta = jnp.stack([p["beta"] for p in params["aspp"]])
    scale, shift = batch_norm_scale_shift(stats, N * Mi, gamma, beta)

    # -- bottleneck weight split per branch; pool-branch taps precomputed as 9
    #    tiny (1, Cmid) rows per image (pooled @ W_pool_tap).
    bw, bb = params["bottleneck"]
    wb_all = split_bottleneck_weight(bw, len(dilations) + 1, Cmid)
    wb_pool = wb_all[0]                                   # (9, Cmid, Cmid) f32
    wb_rest = wb_all[1:].astype(jnp.bfloat16)             # (4, 9, Cmid, Cmid)
    poolc = jnp.einsum("nc,tcd->ntd", pooled, wb_pool)    # (N, 9, Cmid) f32

    # -- final 1x1 conv moved BEFORE the upsample (both linear; align_corners
    #    interpolation rows sum to 1 => identical result); classes padded to a
    #    dense 128-lane block and sliced in the wrapper.
    fw, fb = params["final"]
    nclass = fw.shape[0]
    cpad = 128 * pl.cdiv(nclass, 128)
    fw_kc = jnp.pad(weight_to_taps(fw)[0],
                    ((0, 0), (0, cpad - nclass))).astype(jnp.bfloat16)
    fb_p = jnp.pad(fb, (0, cpad - nclass))[None]          # (1, cpad)

    a2 = jnp.kron(interp_matrix(h, Hf), interp_matrix(w, Wf))  # (h*w, Mi) f32

    up = bottleneck_final_upsample(y_all, rowcol, scale, shift, poolc, wb_rest,
                                   bb[None], fw_kc, fb_p, a2, Hf, Wf)
    out = up[:, :, :nclass].reshape(N, h, w, nclass)      # tiny slice/reshape
    return jnp.transpose(out, (0, 3, 1, 2))               # NCHW [N, 6, h, w]


if __name__ == "__main__":
    key = jax.random.PRNGKey(0)
    k_x, k_p = jax.random.split(key)

    # Small shapes: 512-channel backbone feature map at 8x8, original image 16x16.
    N, Hf, Wf = 2, 8, 8
    h, w = 16, 16
    x_feat = jax.random.normal(k_x, (N, 512, Hf, Wf), jnp.float32)
    params = init_params(k_p)

    out = deeplabv3_head(x_feat, (h, w), params)
    out = jax.block_until_ready(out)
    assert out.shape == (N, 6, h, w), out.shape
    assert bool(jnp.all(jnp.isfinite(out)))
    print("KERNEL_OK")
</pallas_src>

<mosaic_0001>
module attributes {stable_mosaic.version = 11 : i64} {
  func.func @_pool_conv_kernel(%arg0: i32, %arg1: i32, %arg2: memref<1x64x512xbf16, #tpu.memory_space<vmem>>, %arg3: memref<512x256xbf16, #tpu.memory_space<vmem>>, %arg4: memref<1x256xf32, #tpu.memory_space<vmem>>, %arg5: memref<1x1x256xf32, #tpu.memory_space<vmem>>, %arg6: memref<1x512xf32, #tpu.memory_space<vmem>>) attributes {dimension_semantics = [#tpu.dimension_semantics<parallel>, #tpu.dimension_semantics<arbitrary>], iteration_bounds = array<i64: 2, 1>, scalar_prefetch = 0 : i64, scratch_operands = 1 : i64, tpu.core_type = #tpu.core_type<tc>, window_params = [{transform_indices = @transform_0, window_bounds = array<i64: 1, 64, 512>}, {pipeline_mode = #tpu.pipeline_mode<synchronous>, transform_indices = @transform_1, window_bounds = array<i64: 512, 256>}, {pipeline_mode = #tpu.pipeline_mode<synchronous>, transform_indices = @transform_2, window_bounds = array<i64: 1, 256>}, {transform_indices = @transform_3, window_bounds = array<i64: 1, 1, 256>}]} {
    %c0_i32 = arith.constant 0 : i32
    %0 = arith.cmpi eq, %arg1, %c0_i32 : i32
    %1 = arith.extui %0 : i1 to i32
    %c0_i32_0 = arith.constant 0 : i32
    %2 = arith.cmpi ne, %1, %c0_i32_0 : i32
    scf.if %2 {
      %cst_11 = arith.constant 0.000000e+00 : f32
      %24 = vector.broadcast %cst_11 : f32 to vector<1x512xf32>
      %c0_12 = arith.constant 0 : index
      %c0_13 = arith.constant 0 : index
      %25 = vector.load %arg6[%c0_12, %c0_13] : memref<1x512xf32, #tpu.memory_space<vmem>>, vector<1x512xf32>
      tpu.vector_store %arg6[%c0_12, %c0_13], %24 {strides = array<i32>} : memref<1x512xf32, #tpu.memory_space<vmem>>, vector<1x512xf32>,
    } else {
    }
    %c64_i32 = arith.constant 64 : i32
    %3 = arith.muli %arg1, %c64_i32 : i32
    %4 = tpu.iota {dimensions = array<i32: 0>} : vector<64x1xi32>
    %5 = vector.broadcast %3 : i32 to vector<64x1xi32>
    %6 = arith.addi %5, %4 : vector<64x1xi32>
    %c64_i32_1 = arith.constant 64 : i32
    %7 = vector.broadcast %c64_i32_1 : i32 to vector<64x1xi32>
    %8 = arith.cmpi slt, %6, %7 : vector<64x1xi32>
    %c0 = arith.constant 0 : index
    %c0_2 = arith.constant 0 : index
    %c0_3 = arith.constant 0 : index
    %9 = vector.load %arg2[%c0, %c0_2, %c0_3] : memref<1x64x512xbf16, #tpu.memory_space<vmem>>, vector<1x64x512xbf16>
    %10 = vector.shape_cast %9 : vector<1x64x512xbf16> to vector<64x512xbf16>
    %11 = arith.extf %10 : vector<64x512xbf16> to vector<64x512xf32>
    %cst = arith.constant 0.000000e+00 : f32
    %12 = vector.shape_cast %8 : vector<64x1xi1> to vector<64x1xi1>
    %13 = vector.broadcast %12 : vector<64x1xi1> to vector<64x512xi1>
    %14 = vector.broadcast %cst : f32 to vector<64x512xf32>
    %15 = arith.select %13, %11, %14 : vector<64x512xi1>, vector<64x512xf32>
    %c0_4 = arith.constant 0 : index
    %c0_5 = arith.constant 0 : index
    %16 = vector.load %arg6[%c0_4, %c0_5] : memref<1x512xf32, #tpu.memory_space<vmem>>, vector<1x512xf32>
    %cst_6 = arith.constant dense<0.000000e+00> : vector<512xf32>
    %17 = vector.multi_reduction <add>, %15, %cst_6 [0] : vector<64x512xf32> to vector<512xf32>
    %18 = vector.shape_cast %17 : vector<512xf32> to vector<1x512xf32>
    %19 = arith.addf %16, %18 : vector<1x512xf32>
    %c0_7 = arith.constant 0 : index
    %c0_8 = arith.constant 0 : index
    %20 = vector.load %arg6[%c0_7, %c0_8] : memref<1x512xf32, #tpu.memory_space<vmem>>, vector<1x512xf32>
    tpu.vector_store %arg6[%c0_7, %c0_8], %19 {strides = array<i32>} : memref<1x512xf32, #tpu.memory_space<vmem>>, vector<1x512xf32>,
    %c0_i32_9 = arith.constant 0 : i32
    %21 = arith.cmpi eq, %arg1, %c0_i32_9 : i32
    %22 = arith.extui %21 : i1 to i32
    %c0_i32_10 = arith.constant 0 : i32
    %23 = arith.cmpi ne, %22, %c0_i32_10 : i32
    scf.if %23 {
      %c0_11 = arith.constant 0 : index
      %c0_12 = arith.constant 0 : index
      %24 = vector.load %arg6[%c0_11, %c0_12] : memref<1x512xf32, #tpu.memory_space<vmem>>, vector<1x512xf32>
      %cst_13 = arith.constant 1.562500e-02 : f32
      %25 = vector.broadcast %cst_13 : f32 to vector<1x512xf32>
      %26 = arith.mulf %24, %25 : vector<1x512xf32>
      %27 = arith.truncf %26 : vector<1x512xf32> to vector<1x512xbf16>
      %c0_14 = arith.constant 0 : index
      %c0_15 = arith.constant 0 : index
      %28 = vector.load %arg3[%c0_14, %c0_15] : memref<512x256xbf16, #tpu.memory_space<vmem>>, vector<512x256xbf16>
      %cst_16 = arith.constant dense<0.000000e+00> : vector<1x256xf32>
      %29 = tpu.matmul %27, %28, %cst_16 {dimension_numbers = #tpu.dot_dimension_numbers<[1], [0], [0], [1], [0, 0, 1, 1], [], []>} : vector<1x512xbf16>, vector<512x256xbf16>, vector<1x256xf32> -> vector<1x256xf32>
      %c0_17 = arith.constant 0 : index
      %c0_18 = arith.constant 0 : index
      %30 = vector.load %arg4[%c0_17, %c0_18] : memref<1x256xf32, #tpu.memory_space<vmem>>, vector<1x256xf32>
      %31 = arith.addf %29, %30 : vector<1x256xf32>
      %c0_19 = arith.constant 0 : index
      %c0_20 = arith.constant 0 : index
      %c0_21 = arith.constant 0 : index
      %32 = vector.load %arg5[%c0_19, %c0_20, %c0_21] : memref<1x1x256xf32, #tpu.memory_space<vmem>>, vector<1x1x256xf32>
      %33 = vector.shape_cast %32 : vector<1x1x256xf32> to vector<1x256xf32>
      %34 = vector.shape_cast %31 : vector<1x256xf32> to vector<1x1x256xf32>
      tpu.vector_store %arg5[%c0_19, %c0_20, %c0_21], %34 {strides = array<i32>} : memref<1x1x256xf32, #tpu.memory_space<vmem>>, vector<1x1x256xf32>,
    } else {
    }
    return
  }
  func.func @transform_0(%arg0: i32, %arg1: i32) -> (i32, i32, i32) {
    %c0_i32 = arith.constant 0 : i32
    %c0_i32_0 = arith.constant 0 : i32
    return %arg0, %arg1, %c0_i32 : i32, i32, i32
  }
  func.func @transform_1(%arg0: i32, %arg1: i32) -> (i32, i32) {
    %c0_i32 = arith.constant 0 : i32
    %c0_i32_0 = arith.constant 0 : i32
    %c0_i32_1 = arith.constant 0 : i32
    return %c0_i32, %c0_i32_0 : i32, i32
  }
  func.func @transform_2(%arg0: i32, %arg1: i32) -> (i32, i32) {
    %c0_i32 = arith.constant 0 : i32
    %c0_i32_0 = arith.constant 0 : i32
    %c0_i32_1 = arith.constant 0 : i32
    return %c0_i32, %c0_i32_0 : i32, i32
  }
  func.func @transform_3(%arg0: i32, %arg1: i32) -> (i32, i32, i32) {
    %c0_i32 = arith.constant 0 : i32
    %c0_i32_0 = arith.constant 0 : i32
    %c0_i32_1 = arith.constant 0 : i32
    return %arg0, %c0_i32, %c0_i32_0 : i32, i32, i32
  }
}

</mosaic_0001>

<llo_original>
// kernel: tpu_custom_call.1
$region0: #{tpu_custom_call.1}
  #allocation0 [shape = 'u32[]', space=smem, size = 0x4, offset = 0x4, fixed_abs, tag = 'smem constant byte address 0x4 - core index']
  #allocation1 [shape = 'u32[144,128]{1,0:T(1,128)}', space=vmem, size = 0x12000, scoped, tag = 'internal scratch']
  #allocation2 [shape = 'f32[1,512]{1,0:T(1,128)}', space=vmem, size = 0x800, scoped, tag = 'scratch operand']
  %s0 = inlined_call_operand.hbm [shape: bf16[2,64,512], index: 0, kind: input, shape index: {}]
  %s1 = inlined_call_operand.hbm [shape: bf16[512,256], index: 1, kind: input, shape index: {}]
  %s2 = inlined_call_operand.vmem [shape: f32[1,256], index: 2, kind: input, shape index: {}]
  %s3 = inlined_call_operand.hbm [shape: f32[2,1,256], index: 3, kind: output, shape index: {}]
  %s4 = sld [smem:[#allocation0]]
  $region61: #{tpu_custom_call.1} parent=0
    _
  %s6 = ssub.s32 1, %s4
  %s7 = scalar_select 0, %s6, %s4
  $region1: #{tpu_custom_call.1} parent=0
    #allocation3 [shape = 'u8[131072]{0}', space=vmem, size = 0x20000, scoped, tag = 'input window, operand 0']
    #allocation4 [shape = 's32[2]{0}', space=sflag, size = 0x8, scoped, tag = 'scoped memory for tpu_custom_call.1']
    #allocation5 [shape = 's32[2]{0}', space=sflag, size = 0x8, scoped, tag = 'scoped memory for tpu_custom_call.1']
    #allocation6 [shape = 'u8[262144]{0}', space=vmem, size = 0x40000, scoped, tag = 'input window, operand 1, single buffered']
    #allocation7 [shape = 's32[1]{0}', space=sflag, size = 0x4, scoped, tag = 'scoped memory for tpu_custom_call.1']
    #allocation8 [shape = 'u8[2048]{0}', space=vmem, size = 0x800, scoped, tag = 'output window, operand 0']
    %8 = vsyncpa [#allocation4], 0
    %s9 = scalar_lea.sflag [#allocation4], 1
    %10 = vsyncpa %s9, 0
    %11 = vsyncpa [#allocation7], 0
    %12 = vsyncpa [#allocation5], 0
    %s13 = scalar_lea.sflag [#allocation5], 1
    %14 = vsyncpa %s13, 0
    loop: start=0, step=1, limit=4
    $region2: #{tpu_custom_call.1} parent=1 // loop_pre_header
      _
    $region3: #{tpu_custom_call.1} parent=1 // loop_header
      %s16 = sphi 0, %s20
      %p17 = scmp.ge.s32.totalorder %s16, 4
      %s23 = sphi 0, %s35
      %s24 = sphi 0, %s31
      %s25 = sphi 0, %s23
      %s26 = sphi 0, %s24
      %s27 = sphi 0, %s25
      %s28 = sphi 0, %s26
      %s40 = sphi 0, %s42
      %s43 = sphi 0, %s40
      %s44 = sphi 0, %s43
      %s60 = sphi 0, %s44
      %s64 = sphi 0, %s64
      %s66 = sphi 0, %s64
      %s67 = sphi 0, %s66
      %s81 = sphi 0, %s67
      %s85 = sphi 0, %s85
      %s87 = sphi 0, %s85
      %s88 = sphi 0, %s87
      %s102 = sphi 0, %s88
      %s108 = sphi 0, %s110
      %s111 = sphi 0, %s108
      %s112 = sphi 0, %s111
      %s128 = sphi 0, %s112
    $region4: #{tpu_custom_call.1} parent=1 // loop_header_branch
      %19 = sbr.rel (%p17) target = $region8
    $region5: #{tpu_custom_call.1} parent=1 // loop_body
      %s21 = ssub.s32 %s16, 1
      %s22 = ssub.s32 %s16, 2
      %s29 = sadd.s32 1, %s24
      %p30 = scmp.ge.s32.totalorder %s29, 1
      %s31 = scalar_select %p30, 0, %s29
      %s32 = sadd.s32 1, %s23
      %s33 = scalar_select %p30, %s32, %s23
      %p34 = scmp.ge.s32.totalorder %s33, 2
      %s35 = scalar_select %p34, 0, %s33
      %s36 = ssub.s32 %s23, %s35
      %s37 = ssub.s32 %s24, %s31
      %s38 = sor.u32 %s36, %s37
      %p39 = scmp.eq.s32.totalorder %s38, 0
      %s41 = sadd.s32 %s40, 1
      %s42 = scalar_select %p39, %s40, %s41
      %p45 = pneg %p39
      %p46 = scmp.eq.s32.totalorder %s16, 1
      %p47 = por %p45, %p46
      %p48 = scmp.ne.s32.totalorder %s40, %s43
      %p49 = scmp.eq.s32.totalorder %s16, 0
      %p50 = por %p48, %p49
      %p51 = scmp.ne.s32.totalorder %s40, %s43
      %p52 = scmp.eq.s32.totalorder %s21, 1
      %p53 = por %p51, %p52
      %p54 = scmp.ne.s32.totalorder %s43, %s44
      %p55 = scmp.eq.s32.totalorder %s21, 0
      %p56 = por %p54, %p55
      %p57 = scmp.ne.s32.totalorder %s43, %s44
      %p58 = scmp.eq.s32.totalorder %s22, 1
      %p59 = por %p57, %p58
      %p61 = scmp.ne.s32.totalorder %s44, %s60
      %p62 = scmp.eq.s32.totalorder %s22, 0
      %p63 = por %p61, %p62
      %s65 = sadd.s32 %s64, 1
      %p68 = scmp.eq.s32.totalorder %s16, 1
      %p69 = scmp.ne.s32.totalorder %s64, %s66
      %p70 = scmp.eq.s32.totalorder %s16, 0
      %p71 = por %p69, %p70
      %p72 = scmp.ne.s32.totalorder %s64, %s66
      %p73 = scmp.eq.s32.totalorder %s21, 1
      %p74 = por %p72, %p73
      %p75 = scmp.ne.s32.totalorder %s66, %s67
      %p76 = scmp.eq.s32.totalorder %s21, 0
      %p77 = por %p75, %p76
      %p78 = scmp.ne.s32.totalorder %s66, %s67
      %p79 = scmp.eq.s32.totalorder %s22, 1
      %p80 = por %p78, %p79
      %p82 = scmp.ne.s32.totalorder %s67, %s81
      %p83 = scmp.eq.s32.totalorder %s22, 0
      %p84 = por %p82, %p83
      %s86 = sadd.s32 %s85, 1
      %p89 = scmp.eq.s32.totalorder %s16, 1
      %p90 = scmp.ne.s32.totalorder %s85, %s87
      %p91 = scmp.eq.s32.totalorder %s16, 0
      %p92 = por %p90, %p91
      %p93 = scmp.ne.s32.totalorder %s85, %s87
      %p94 = scmp.eq.s32.totalorder %s21, 1
      %p95 = por %p93, %p94
      %p96 = scmp.ne.s32.totalorder %s87, %s88
      %p97 = scmp.eq.s32.totalorder %s21, 0
      %p98 = por %p96, %p97
      %p99 = scmp.ne.s32.totalorder %s87, %s88
      %p100 = scmp.eq.s32.totalorder %s22, 1
      %p101 = por %p99, %p100
      %p103 = scmp.ne.s32.totalorder %s88, %s102
      %p104 = scmp.eq.s32.totalorder %s22, 0
      %p105 = por %p103, %p104
      %s106 = ssub.s32 %s23, %s35
      %p107 = scmp.eq.s32.totalorder %s106, 0
      %s109 = sadd.s32 %s108, 1
      %s110 = scalar_select %p107, %s108, %s109
      %p113 = pneg %p107
      %p114 = scmp.eq.s32.totalorder %s16, 1
      %p115 = por %p113, %p114
      %p116 = scmp.ne.s32.totalorder %s108, %s111
      %p117 = scmp.eq.s32.totalorder %s16, 0
      %p118 = por %p116, %p117
      %p119 = scmp.ne.s32.totalorder %s108, %s111
      %p120 = scmp.eq.s32.totalorder %s21, 1
      %p121 = por %p119, %p120
      %p122 = scmp.ne.s32.totalorder %s111, %s112
      %p123 = scmp.eq.s32.totalorder %s21, 0
      %p124 = por %p122, %p123
      %p125 = scmp.ne.s32.totalorder %s111, %s112
      %p126 = scmp.eq.s32.totalorder %s22, 1
      %p127 = por %p125, %p126
      %p129 = scmp.ne.s32.totalorder %s112, %s128
      %p130 = scmp.eq.s32.totalorder %s22, 0
      %p131 = por %p129, %p130
      %p132 = scmp.le.s32.totalorder 1, %s16
      %p133 = scmp.lt.s32.totalorder %s16, 3
      %p134 = pnand %p132, %p133
      %p135 = pneg %p134
      // Predicated region
      $region9: #{tpu_custom_call.1} parent=5 // pred_check
        _
      $region10: #{tpu_custom_call.1} parent=5 // pred_check_branch
        %137 = sbr.rel (%p134) target = $region12
      $region11: #{tpu_custom_call.1} parent=5 // pred_region
        %s138 = ssub.s32 %s16, 1
        // Predicated region
        $region13: #{tpu_custom_call.1} parent=11 // pred_check
          %p139 = pneg %p77
        $region14: #{tpu_custom_call.1} parent=11 // pred_check_branch
          %141 = sbr.rel (%p139) target = $region16
        $region15: #{tpu_custom_call.1} parent=11 // pred_region
          %s143 = ssub.s32 8192, 8192
          %144 = vsyncadd [#allocation7], %s143
          %s145 = sshll.u32 [#allocation6], 4
          %s146 = int_to_ptr.vmem [resolvable:$true] %s145
          %151 = dma.hbm_to_vmem [thread:$0]  %s1, 8192, %s146, [#allocation7], 128, 128, 8
        $region16: #{tpu_custom_call.1} parent=11 // pred_fallthru
          _
        // Predicated region
        $region17: #{tpu_custom_call.1} parent=11 // pred_check
          %p152 = pneg %p98
        $region18: #{tpu_custom_call.1} parent=11 // pred_check_branch
          %154 = sbr.rel (%p152) target = $region20
        $region19: #{tpu_custom_call.1} parent=11 // pred_region
          _
        $region20: #{tpu_custom_call.1} parent=11 // pred_fallthru
          _
      $region12: #{tpu_custom_call.1} parent=5 // pred_fallthru
        _
      %p155 = scmp.lt.s32.totalorder %s16, 2
      // Predicated region
      $region21: #{tpu_custom_call.1} parent=5 // pred_check
        %p156 = pneg %p155
      $region22: #{tpu_custom_call.1} parent=5 // pred_check_branch
        %158 = sbr.rel (%p156) target = $region24
      $region23: #{tpu_custom_call.1} parent=5 // pred_region
        // Predicated region
        $region25: #{tpu_custom_call.1} parent=23 // pred_check
          %p159 = pneg %p50
        $region26: #{tpu_custom_call.1} parent=23 // pred_check_branch
          %161 = sbr.rel (%p159) target = $region28
        $region27: #{tpu_custom_call.1} parent=23 // pred_region
          %s162 = sand.u32 %s40, 1
          %s163 = scalar_lea.sflag [#allocation4], %s162
          %s164 = sand.u32 %s40, 1
          %s165 = smul.addr %s164, 128
          %s166 = scalar_lea.vmem [#allocation3], %s165
          %s167 = smul.u32 8, %s24
          %s169 = ssub.s32 2048, 2048
          %170 = vsyncadd %s163, %s169
          %s171 = smul.addr %s167, 4
          %s172 = smul.addr %s23, 32
          %s173 = sadd.s32 %s171, %s172
          %s174 = smul.addr %s173, 64
          %s175 = scalar_lea.hbm %s0, %s174
          %s176 = sshll.u32 %s166, 4
          %s177 = int_to_ptr.vmem [resolvable:$true] %s176
          %182 = dma.hbm_to_vmem [thread:$0]  %s175, 2048, %s177, %s163, 256, 256, 16
        $region28: #{tpu_custom_call.1} parent=23 // pred_fallthru
          _
      $region24: #{tpu_custom_call.1} parent=5 // pred_fallthru
        _
      %p183 = scmp.le.s32.totalorder 1, %s16
      %p184 = scmp.lt.s32.totalorder %s16, 3
      %p185 = pnand %p183, %p184
      %p186 = pneg %p185
      // Predicated region
      $region29: #{tpu_custom_call.1} parent=5 // pred_check
        _
      $region30: #{tpu_custom_call.1} parent=5 // pred_check_branch
        %188 = sbr.rel (%p185) target = $region32
      $region31: #{tpu_custom_call.1} parent=5 // pred_region
        %s189 = ssub.s32 %s16, 1
        %s190 = sand.u32 %s43, 1
        %s191 = scalar_lea.sflag [#allocation4], %s190
        %s192 = sand.u32 %s43, 1
        %s193 = smul.addr %s192, 128
        %s194 = scalar_lea.vmem [#allocation3], %s193
        // Predicated region
        $region33: #{tpu_custom_call.1} parent=31 // pred_check
          %p195 = pneg %p56
        $region34: #{tpu_custom_call.1} parent=31 // pred_check_branch
          %197 = sbr.rel (%p195) target = $region36
        $region35: #{tpu_custom_call.1} parent=31 // pred_region
          %198 = dma.done %s191, 2048
        $region36: #{tpu_custom_call.1} parent=31 // pred_fallthru
          _
        // Predicated region
        $region37: #{tpu_custom_call.1} parent=31 // pred_check
          %p199 = pneg %p77
        $region38: #{tpu_custom_call.1} parent=31 // pred_check_branch
          %201 = sbr.rel (%p199) target = $region40
        $region39: #{tpu_custom_call.1} parent=31 // pred_region
          %202 = dma.done [#allocation7], 8192
        $region40: #{tpu_custom_call.1} parent=31 // pred_fallthru
          _
        %s203 = sand.u32 %s43, 1
        %s204 = scalar_lea.sflag [#allocation4], %s203
        %s205 = sand.u32 %s43, 1
        %s206 = smul.addr %s205, 128
        %s207 = scalar_lea.vmem [#allocation3], %s206
        %p208 = pneg %p56
        %p209 = pneg %p53
        %p210 = pneg %p77
        %p211 = pneg %p74
        %p212 = pneg %p98
        %p213 = pneg %p95
        %p214 = pneg %p124
        %p215 = pneg %p121
        %s216 = sand.u32 %s111, 1
        %s217 = scalar_lea.sflag [#allocation5], %s216
        %s218 = sand.u32 %s111, 1
        %s219 = smul.addr %s218, 2
        %s220 = scalar_lea.vmem [#allocation8], %s219
        %s221 = smul.u32 8, %s26
        %p222 = scmp.eq.s32.totalorder %s26, 0
        // Predicated region
        $region41: #{tpu_custom_call.1} parent=31 // pred_check
          %p223 = pneg %p222
        $region42: #{tpu_custom_call.1} parent=31 // pred_check_branch
          %225 = sbr.rel (%p223) target = $region44
        $region43: #{tpu_custom_call.1} parent=31 // pred_region
          %v226 = vlaneseq
          %vm227 = vcmp.ge.s32.totalorder %v226, 0
          %vm228 = vcmp.lt.s32.totalorder %v226, 512
          %vm229 = vmand %vm227, %vm228
          %230 = vst.msk [vmem:[#allocation2] sm:$0xf] %vm229, 0.0
        $region44: #{tpu_custom_call.1} parent=31 // pred_fallthru
          _
        %s231 = smul.u32 %s26, 64
        %v232 = vlaneseq
        %v233 = vshrl.u32 %v232, 7
        %v234 = vadd.s32 %v233, 8
        %v235 = vadd.s32 %v233, 16
        %v236 = vadd.s32 %v233, 24
        %v237 = vadd.s32 %v233, 32
        %v238 = vadd.s32 %v233, 40
        %v239 = vadd.s32 %v233, 48
        %v240 = vadd.s32 %v233, 56
        %v241 = vstv %s231
        %v242 = vadd.s32 %v241, %v233
        %v243 = vadd.s32 %v241, %v234
        %v244 = vadd.s32 %v241, %v235
        %v245 = vadd.s32 %v241, %v236
        %v246 = vadd.s32 %v241, %v237
        %v247 = vadd.s32 %v241, %v238
        %v248 = vadd.s32 %v241, %v239
        %v249 = vadd.s32 %v241, %v240
        %vm250 = vcmp.lt.s32.totalorder %v242, 64
        %vm251 = vcmp.lt.s32.totalorder %v243, 64
        %vm252 = vcmp.lt.s32.totalorder %v244, 64
        %vm253 = vcmp.lt.s32.totalorder %v245, 64
        %vm254 = vcmp.lt.s32.totalorder %v246, 64
        %vm255 = vcmp.lt.s32.totalorder %v247, 64
        %vm256 = vcmp.lt.s32.totalorder %v248, 64
        %vm257 = vcmp.lt.s32.totalorder %v249, 64
        %v258 = vld [vmem:[%s194] sm:$0xff]
        %v259 = vld [vmem:[%s194 + $0x8] sm:$0xff]
        %v260 = vld [vmem:[%s194 + $0x10] sm:$0xff]
        %v261 = vld [vmem:[%s194 + $0x18] sm:$0xff]
        %v262 = vld [vmem:[%s194 + $0x20] sm:$0xff]
        %v263 = vld [vmem:[%s194 + $0x28] sm:$0xff]
        %v264 = vld [vmem:[%s194 + $0x30] sm:$0xff]
        %v265 = vld [vmem:[%s194 + $0x38] sm:$0xff]
        %v266 = vld [vmem:[%s194 + $0x40] sm:$0xff]
        %v267 = vld [vmem:[%s194 + $0x48] sm:$0xff]
        %v268 = vld [vmem:[%s194 + $0x50] sm:$0xff]
        %v269 = vld [vmem:[%s194 + $0x58] sm:$0xff]
        %v270 = vld [vmem:[%s194 + $0x60] sm:$0xff]
        %v271 = vld [vmem:[%s194 + $0x68] sm:$0xff]
        %v272 = vld [vmem:[%s194 + $0x70] sm:$0xff]
        %v273 = vld [vmem:[%s194 + $0x78] sm:$0xff]
        %v274 = vunpack.c.l.bf16 %v258
        %v275 = vunpack.c.h.bf16 %v258
        %v276 = vunpack.c.l.bf16 %v259
        %v277 = vunpack.c.h.bf16 %v259
        %v278 = vunpack.c.l.bf16 %v260
        %v279 = vunpack.c.h.bf16 %v260
        %v280 = vunpack.c.l.bf16 %v261
        %v281 = vunpack.c.h.bf16 %v261
        %v282 = vunpack.c.l.bf16 %v262
        %v283 = vunpack.c.h.bf16 %v262
        %v284 = vunpack.c.l.bf16 %v263
        %v285 = vunpack.c.h.bf16 %v263
        %v286 = vunpack.c.l.bf16 %v264
        %v287 = vunpack.c.h.bf16 %v264
        %v288 = vunpack.c.l.bf16 %v265
        %v289 = vunpack.c.h.bf16 %v265
        %v290 = vunpack.c.l.bf16 %v266
        %v291 = vunpack.c.h.bf16 %v266
        %v292 = vunpack.c.l.bf16 %v267
        %v293 = vunpack.c.h.bf16 %v267
        %v294 = vunpack.c.l.bf16 %v268
        %v295 = vunpack.c.h.bf16 %v268
        %v296 = vunpack.c.l.bf16 %v269
        %v297 = vunpack.c.h.bf16 %v269
        %v298 = vunpack.c.l.bf16 %v270
        %v299 = vunpack.c.h.bf16 %v270
        %v300 = vunpack.c.l.bf16 %v271
        %v301 = vunpack.c.h.bf16 %v271
        %v302 = vunpack.c.l.bf16 %v272
        %v303 = vunpack.c.h.bf16 %v272
        %v304 = vunpack.c.l.bf16 %v273
        %v305 = vunpack.c.h.bf16 %v273
        %v306 = vsel %vm250, 1, 0
        %v307 = vsel %vm251, 1, 0
        %v308 = vsel %vm252, 1, 0
        %v309 = vsel %vm253, 1, 0
        %v310 = vsel %vm254, 1, 0
        %v311 = vsel %vm255, 1, 0
        %v312 = vsel %vm256, 1, 0
        %v313 = vsel %vm257, 1, 0
        %vm314 = vcmp.eq.s32.totalorder %v306, 1
        %vm315 = vcmp.eq.s32.totalorder %v307, 1
        %vm316 = vcmp.eq.s32.totalorder %v308, 1
        %vm317 = vcmp.eq.s32.totalorder %v309, 1
        %vm318 = vcmp.eq.s32.totalorder %v310, 1
        %vm319 = vcmp.eq.s32.totalorder %v311, 1
        %vm320 = vcmp.eq.s32.totalorder %v312, 1
        %vm321 = vcmp.eq.s32.totalorder %v313, 1
        %v322 = vsel %vm314, %v274, 0.0
        %v323 = vsel %vm314, %v275, 0.0
        %v324 = vsel %vm314, %v276, 0.0
        %v325 = vsel %vm314, %v277, 0.0
        %v326 = vsel %vm315, %v278, 0.0
        %v327 = vsel %vm315, %v279, 0.0
        %v328 = vsel %vm315, %v280, 0.0
        %v329 = vsel %vm315, %v281, 0.0
        %v330 = vsel %vm316, %v282, 0.0
        %v331 = vsel %vm316, %v283, 0.0
        %v332 = vsel %vm316, %v284, 0.0
        %v333 = vsel %vm316, %v285, 0.0
        %v334 = vsel %vm317, %v286, 0.0
        %v335 = vsel %vm317, %v287, 0.0
        %v336 = vsel %vm317, %v288, 0.0
        %v337 = vsel %vm317, %v289, 0.0
        %v338 = vsel %vm318, %v290, 0.0
        %v339 = vsel %vm318, %v291, 0.0
        %v340 = vsel %vm318, %v292, 0.0
        %v341 = vsel %vm318, %v293, 0.0
        %v342 = vsel %vm319, %v294, 0.0
        %v343 = vsel %vm319, %v295, 0.0
        %v344 = vsel %vm319, %v296, 0.0
        %v345 = vsel %vm319, %v297, 0.0
        %v346 = vsel %vm320, %v298, 0.0
        %v347 = vsel %vm320, %v299, 0.0
        %v348 = vsel %vm320, %v300, 0.0
        %v349 = vsel %vm320, %v301, 0.0
        %v350 = vsel %vm321, %v302, 0.0
        %v351 = vsel %vm321, %v303, 0.0
        %v352 = vsel %vm321, %v304, 0.0
        %v353 = vsel %vm321, %v305, 0.0
        %v354 = vld [vmem:[#allocation2] sm:$0xf]
        %v355 = vadd.f32 %v322, %v326
        %v356 = vadd.f32 %v355, %v330
        %v357 = vadd.f32 %v356, %v334
        %v358 = vadd.f32 %v357, %v338
        %v359 = vadd.f32 %v358, %v342
        %v360 = vadd.f32 %v359, %v346
        %v361 = vadd.f32 %v360, %v350
        %v362 = vrot.slane %v361, 4
        %v363 = vadd.f32 %v361, %v362
        %v364 = vrot.slane %v363, 2
        %v365 = vadd.f32 %v363, %v364
        %v366 = vrot.slane %v365, 1
        %v367 = vadd.f32 %v365, %v366
        %v368 = vadd.f32 %v323, %v327
        %v369 = vadd.f32 %v368, %v331
        %v370 = vadd.f32 %v369, %v335
        %v371 = vadd.f32 %v370, %v339
        %v372 = vadd.f32 %v371, %v343
        %v373 = vadd.f32 %v372, %v347
        %v374 = vadd.f32 %v373, %v351
        %v375 = vrot.slane %v374, 4
        %v376 = vadd.f32 %v374, %v375
        %v377 = vrot.slane %v376, 2
        %v378 = vadd.f32 %v376, %v377
        %v379 = vrot.slane %v378, 1
        %v380 = vadd.f32 %v378, %v379
        %v381 = vadd.f32 %v324, %v328
        %v382 = vadd.f32 %v381, %v332
        %v383 = vadd.f32 %v382, %v336
        %v384 = vadd.f32 %v383, %v340
        %v385 = vadd.f32 %v384, %v344
        %v386 = vadd.f32 %v385, %v348
        %v387 = vadd.f32 %v386, %v352
        %v388 = vrot.slane %v387, 4
        %v389 = vadd.f32 %v387, %v388
        %v390 = vrot.slane %v389, 2
        %v391 = vadd.f32 %v389, %v390
        %v392 = vrot.slane %v391, 1
        %v393 = vadd.f32 %v391, %v392
        %v394 = vadd.f32 %v325, %v329
        %v395 = vadd.f32 %v394, %v333
        %v396 = vadd.f32 %v395, %v337
        %v397 = vadd.f32 %v396, %v341
        %v398 = vadd.f32 %v397, %v345
        %v399 = vadd.f32 %v398, %v349
        %v400 = vadd.f32 %v399, %v353
        %v401 = vrot.slane %v400, 4
        %v402 = vadd.f32 %v400, %v401
        %v403 = vrot.slane %v402, 2
        %v404 = vadd.f32 %v402, %v403
        %v405 = vrot.slane %v404, 1
        %v406 = vadd.f32 %v404, %v405
        %v411 = vcombine.low %v367, %v380
        %v412 = vcombine.low %v393, %v406
        %v414 = vunpack.c.l.s4 1966171168
        %v415 = vunpack.c.0.s8 %v414
        %v416 = vlaneseq
        %v417 = vshrl.u32 %v416, 7
        %v418 = vsub.s32 %v415, %v417
        %v419 = vrot.slane %v411, %v418
        %v421 = vunpack.c.l.s4 1966171168
        %v422 = vunpack.c.0.s8 %v421
        %v423 = vlaneseq
        %v424 = vshrl.u32 %v423, 7
        %v425 = vsub.s32 %v422, %v424
        %v426 = vrot.slane %v412, %v425
        %v427 = vcombine.low %v419, %v426
        %v429 = vunpack.c.l.s4 1966171168
        %v430 = vunpack.c.0.s8 %v429
        %v431 = vlaneseq
        %v432 = vshrl.u32 %v431, 7
        %v433 = vsub.s32 %v430, %v432
        %v434 = vrot.slane %v427, %v433
        %v436 = vadd.f32 %v354, %v434
        %v437 = vlaneseq
        %vm438 = vcmp.ge.s32.totalorder %v437, 0
        %vm439 = vcmp.lt.s32.totalorder %v437, 512
        %vm440 = vmand %vm438, %vm439
        %441 = vst.msk [vmem:[#allocation2] sm:$0xf] %vm440, %v436
        // Predicated region
        $region45: #{tpu_custom_call.1} parent=31 // pred_check
          %p442 = pneg %p222
        $region46: #{tpu_custom_call.1} parent=31 // pred_check_branch
          %444 = sbr.rel (%p442) target = $region48
        $region47: #{tpu_custom_call.1} parent=31 // pred_region
          %v445 = vld [vmem:[#allocation2] sm:$0xf]
          %v446 = vmul.f32 %v445, 0.015625
          %v448 = vlaneseq
          %v449 = vshrl.u32 %v448, 7
          %v450 = vsub.s32 0, %v449
          %v451 = vrot.slane %v446, %v450
          %v452 = vlaneseq
          %v453 = vshrl.u32 %v452, 7
          %v454 = vsub.s32 1, %v453
          %v455 = vrot.slane %v446, %v454
          %v456 = vlaneseq
          %v457 = vshrl.u32 %v456, 7
          %v458 = vsub.s32 2, %v457
          %v459 = vrot.slane %v446, %v458
          %v460 = vlaneseq
          %v461 = vshrl.u32 %v460, 7
          %v462 = vsub.s32 3, %v461
          %v463 = vrot.slane %v446, %v462
          %v468 = vpack.c.bf16 %v451, %v451
          %v469 = vpack.c.bf16 %v455, %v455
          %v470 = vpack.c.bf16 %v459, %v459
          %v471 = vpack.c.bf16 %v463, %v463
          %v472 = vld [vmem:[#allocation6] sm:$0xff]
          %v473 = vld [vmem:[#allocation6 + $0x8] sm:$0xff]
          %v474 = vld [vmem:[#allocation6 + $0x10] sm:$0xff]
          %v475 = vld [vmem:[#allocation6 + $0x18] sm:$0xff]
          %v476 = vld [vmem:[#allocation6 + $0x20] sm:$0xff]
          %v477 = vld [vmem:[#allocation6 + $0x28] sm:$0xff]
          %v478 = vld [vmem:[#allocation6 + $0x30] sm:$0xff]
          %v479 = vld [vmem:[#allocation6 + $0x38] sm:$0xff]
          %v480 = vld [vmem:[#allocation6 + $0x40] sm:$0xff]
          %v481 = vld [vmem:[#allocation6 + $0x48] sm:$0xff]
          %v482 = vld [vmem:[#allocation6 + $0x50] sm:$0xff]
          %v483 = vld [vmem:[#allocation6 + $0x58] sm:$0xff]
          %v484 = vld [vmem:[#allocation6 + $0x60] sm:$0xff]
          %v485 = vld [vmem:[#allocation6 + $0x68] sm:$0xff]
          %v486 = vld [vmem:[#allocation6 + $0x70] sm:$0xff]
          %v487 = vld [vmem:[#allocation6 + $0x78] sm:$0xff]
          %v488 = vld [vmem:[#allocation6 + $0x80] sm:$0xff]
          %v489 = vld [vmem:[#allocation6 + $0x88] sm:$0xff]
          %v490 = vld [vmem:[#allocation6 + $0x90] sm:$0xff]
          %v491 = vld [vmem:[#allocation6 + $0x98] sm:$0xff]
          %v492 = vld [vmem:[#allocation6 + $0xa0] sm:$0xff]
          %v493 = vld [vmem:[#allocation6 + $0xa8] sm:$0xff]
          %v494 = vld [vmem:[#allocation6 + $0xb0] sm:$0xff]
          %v495 = vld [vmem:[#allocation6 + $0xb8] sm:$0xff]
          %v496 = vld [vmem:[#allocation6 + $0xc0] sm:$0xff]
          %v497 = vld [vmem:[#allocation6 + $0xc8] sm:$0xff]
          %v498 = vld [vmem:[#allocation6 + $0xd0] sm:$0xff]
          %v499 = vld [vmem:[#allocation6 + $0xd8] sm:$0xff]
          %v500 = vld [vmem:[#allocation6 + $0xe0] sm:$0xff]
          %v501 = vld [vmem:[#allocation6 + $0xe8] sm:$0xff]
          %v502 = vld [vmem:[#allocation6 + $0xf0] sm:$0xff]
          %v503 = vld [vmem:[#allocation6 + $0xf8] sm:$0xff]
          %v504 = vld [vmem:[#allocation6 + $0x100] sm:$0xff]
          %v505 = vld [vmem:[#allocation6 + $0x108] sm:$0xff]
          %v506 = vld [vmem:[#allocation6 + $0x110] sm:$0xff]
          %v507 = vld [vmem:[#allocation6 + $0x118] sm:$0xff]
          %v508 = vld [vmem:[#allocation6 + $0x120] sm:$0xff]
          %v509 = vld [vmem:[#allocation6 + $0x128] sm:$0xff]
          %v510 = vld [vmem:[#allocation6 + $0x130] sm:$0xff]
          %v511 = vld [vmem:[#allocation6 + $0x138] sm:$0xff]
          %v512 = vld [vmem:[#allocation6 + $0x140] sm:$0xff]
          %v513 = vld [vmem:[#allocation6 + $0x148] sm:$0xff]
          %v514 = vld [vmem:[#allocation6 + $0x150] sm:$0xff]
          %v515 = vld [vmem:[#allocation6 + $0x158] sm:$0xff]
          %v516 = vld [vmem:[#allocation6 + $0x160] sm:$0xff]
          %v517 = vld [vmem:[#allocation6 + $0x168] sm:$0xff]
          %v518 = vld [vmem:[#allocation6 + $0x170] sm:$0xff]
          %v519 = vld [vmem:[#allocation6 + $0x178] sm:$0xff]
          %v520 = vld [vmem:[#allocation6 + $0x180] sm:$0xff]
          %v521 = vld [vmem:[#allocation6 + $0x188] sm:$0xff]
          %v522 = vld [vmem:[#allocation6 + $0x190] sm:$0xff]
          %v523 = vld [vmem:[#allocation6 + $0x198] sm:$0xff]
          %v524 = vld [vmem:[#allocation6 + $0x1a0] sm:$0xff]
          %v525 = vld [vmem:[#allocation6 + $0x1a8] sm:$0xff]
          %v526 = vld [vmem:[#allocation6 + $0x1b0] sm:$0xff]
          %v527 = vld [vmem:[#allocation6 + $0x1b8] sm:$0xff]
          %v528 = vld [vmem:[#allocation6 + $0x1c0] sm:$0xff]
          %v529 = vld [vmem:[#allocation6 + $0x1c8] sm:$0xff]
          %v530 = vld [vmem:[#allocation6 + $0x1d0] sm:$0xff]
          %v531 = vld [vmem:[#allocation6 + $0x1d8] sm:$0xff]
          %v532 = vld [vmem:[#allocation6 + $0x1e0] sm:$0xff]
          %v533 = vld [vmem:[#allocation6 + $0x1e8] sm:$0xff]
          %v534 = vld [vmem:[#allocation6 + $0x1f0] sm:$0xff]
          %v535 = vld [vmem:[#allocation6 + $0x1f8] sm:$0xff]
          %v536 = vld [vmem:[%s2] sm:$0x3]
          %v601 = vunpack.c.l.b16 %v472
          %v602 = vunpack.c.h.b16 %v472
          %v603 = vunpack.c.l.b16 %v473
          %v604 = vunpack.c.h.b16 %v473
          %v605 = vunpack.c.l.b16 %v474
          %v606 = vunpack.c.h.b16 %v474
          %v607 = vunpack.c.l.b16 %v475
          %v608 = vunpack.c.h.b16 %v475
          %v609 = vunpack.c.l.b16 %v476
          %v610 = vunpack.c.h.b16 %v476
          %v611 = vunpack.c.l.b16 %v477
          %v612 = vunpack.c.h.b16 %v477
          %v613 = vunpack.c.l.b16 %v478
          %v614 = vunpack.c.h.b16 %v478
          %v615 = vunpack.c.l.b16 %v479
          %v616 = vunpack.c.h.b16 %v479
          %v617 = vunpack.c.l.b16 %v480
          %v618 = vunpack.c.h.b16 %v480
          %v619 = vunpack.c.l.b16 %v481
          %v620 = vunpack.c.h.b16 %v481
          %v621 = vunpack.c.l.b16 %v482
          %v622 = vunpack.c.h.b16 %v482
          %v623 = vunpack.c.l.b16 %v483
          %v624 = vunpack.c.h.b16 %v483
          %v625 = vunpack.c.l.b16 %v484
          %v626 = vunpack.c.h.b16 %v484
          %v627 = vunpack.c.l.b16 %v485
          %v628 = vunpack.c.h.b16 %v485
          %v629 = vunpack.c.l.b16 %v486
          %v630 = vunpack.c.h.b16 %v486
          %v631 = vunpack.c.l.b16 %v487
          %v632 = vunpack.c.h.b16 %v487
          %v633 = vunpack.c.l.b16 %v488
          %v634 = vunpack.c.h.b16 %v488
          %v635 = vunpack.c.l.b16 %v489
          %v636 = vunpack.c.h.b16 %v489
          %v637 = vunpack.c.l.b16 %v490
          %v638 = vunpack.c.h.b16 %v490
          %v639 = vunpack.c.l.b16 %v491
          %v640 = vunpack.c.h.b16 %v491
          %v641 = vunpack.c.l.b16 %v492
          %v642 = vunpack.c.h.b16 %v492
          %v643 = vunpack.c.l.b16 %v493
          %v644 = vunpack.c.h.b16 %v493
          %v645 = vunpack.c.l.b16 %v494
          %v646 = vunpack.c.h.b16 %v494
          %v647 = vunpack.c.l.b16 %v495
          %v648 = vunpack.c.h.b16 %v495
          %v649 = vunpack.c.l.b16 %v496
          %v650 = vunpack.c.h.b16 %v496
          %v651 = vunpack.c.l.b16 %v497
          %v652 = vunpack.c.h.b16 %v497
          %v653 = vunpack.c.l.b16 %v498
          %v654 = vunpack.c.h.b16 %v498
          %v655 = vunpack.c.l.b16 %v499
          %v656 = vunpack.c.h.b16 %v499
          %v657 = vunpack.c.l.b16 %v500
          %v658 = vunpack.c.h.b16 %v500
          %v659 = vunpack.c.l.b16 %v501
          %v660 = vunpack.c.h.b16 %v501
          %v661 = vunpack.c.l.b16 %v502
          %v662 = vunpack.c.h.b16 %v502
          %v663 = vunpack.c.l.b16 %v503
          %v664 = vunpack.c.h.b16 %v503
          %v665 = vunpack.c.l.b16 %v504
          %v666 = vunpack.c.h.b16 %v504
          %v667 = vunpack.c.l.b16 %v505
          %v668 = vunpack.c.h.b16 %v505
          %v669 = vunpack.c.l.b16 %v506
          %v670 = vunpack.c.h.b16 %v506
          %v671 = vunpack.c.l.b16 %v507
          %v672 = vunpack.c.h.b16 %v507
          %v673 = vunpack.c.l.b16 %v508
          %v674 = vunpack.c.h.b16 %v508
          %v675 = vunpack.c.l.b16 %v509
          %v676 = vunpack.c.h.b16 %v509
          %v677 = vunpack.c.l.b16 %v510
          %v678 = vunpack.c.h.b16 %v510
          %v679 = vunpack.c.l.b16 %v511
          %v680 = vunpack.c.h.b16 %v511
          %v681 = vunpack.c.l.b16 %v512
          %v682 = vunpack.c.h.b16 %v512
          %v683 = vunpack.c.l.b16 %v513
          %v684 = vunpack.c.h.b16 %v513
          %v685 = vunpack.c.l.b16 %v514
          %v686 = vunpack.c.h.b16 %v514
          %v687 = vunpack.c.l.b16 %v515
          %v688 = vunpack.c.h.b16 %v515
          %v689 = vunpack.c.l.b16 %v516
          %v690 = vunpack.c.h.b16 %v516
          %v691 = vunpack.c.l.b16 %v517
          %v692 = vunpack.c.h.b16 %v517
          %v693 = vunpack.c.l.b16 %v518
          %v694 = vunpack.c.h.b16 %v518
          %v695 = vunpack.c.l.b16 %v519
          %v696 = vunpack.c.h.b16 %v519
          %v697 = vunpack.c.l.b16 %v520
          %v698 = vunpack.c.h.b16 %v520
          %v699 = vunpack.c.l.b16 %v521
          %v700 = vunpack.c.h.b16 %v521
          %v701 = vunpack.c.l.b16 %v522
          %v702 = vunpack.c.h.b16 %v522
          %v703 = vunpack.c.l.b16 %v523
          %v704 = vunpack.c.h.b16 %v523
          %v705 = vunpack.c.l.b16 %v524
          %v706 = vunpack.c.h.b16 %v524
          %v707 = vunpack.c.l.b16 %v525
          %v708 = vunpack.c.h.b16 %v525
          %v709 = vunpack.c.l.b16 %v526
          %v710 = vunpack.c.h.b16 %v526
          %v711 = vunpack.c.l.b16 %v527
          %v712 = vunpack.c.h.b16 %v527
          %v713 = vunpack.c.l.b16 %v528
          %v714 = vunpack.c.h.b16 %v528
          %v715 = vunpack.c.l.b16 %v529
          %v716 = vunpack.c.h.b16 %v529
          %v717 = vunpack.c.l.b16 %v530
          %v718 = vunpack.c.h.b16 %v530
          %v719 = vunpack.c.l.b16 %v531
          %v720 = vunpack.c.h.b16 %v531
          %v721 = vunpack.c.l.b16 %v532
          %v722 = vunpack.c.h.b16 %v532
          %v723 = vunpack.c.l.b16 %v533
          %v724 = vunpack.c.h.b16 %v533
          %v725 = vunpack.c.l.b16 %v534
          %v726 = vunpack.c.h.b16 %v534
          %v727 = vunpack.c.l.b16 %v535
          %v728 = vunpack.c.h.b16 %v535
          %v729 = vpack.c.b16 %v603, %v601
          %v730 = vpack.c.b16 %v604, %v602
          %v731 = vpack.c.b16 %v607, %v605
          %v732 = vpack.c.b16 %v608, %v606
          %v733 = vpack.c.b16 %v611, %v609
          %v734 = vpack.c.b16 %v612, %v610
          %v735 = vpack.c.b16 %v615, %v613
          %v736 = vpack.c.b16 %v616, %v614
          %v737 = vpack.c.b16 %v619, %v617
          %v738 = vpack.c.b16 %v620, %v618
          %v739 = vpack.c.b16 %v623, %v621
          %v740 = vpack.c.b16 %v624, %v622
          %v741 = vpack.c.b16 %v627, %v625
          %v742 = vpack.c.b16 %v628, %v626
          %v743 = vpack.c.b16 %v631, %v629
          %v744 = vpack.c.b16 %v632, %v630
          %v745 = vpack.c.b16 %v635, %v633
          %v746 = vpack.c.b16 %v636, %v634
          %v747 = vpack.c.b16 %v639, %v637
          %v748 = vpack.c.b16 %v640, %v638
          %v749 = vpack.c.b16 %v643, %v641
          %v750 = vpack.c.b16 %v644, %v642
          %v751 = vpack.c.b16 %v647, %v645
          %v752 = vpack.c.b16 %v648, %v646
          %v753 = vpack.c.b16 %v651, %v649
          %v754 = vpack.c.b16 %v652, %v650
          %v755 = vpack.c.b16 %v655, %v653
          %v756 = vpack.c.b16 %v656, %v654
          %v757 = vpack.c.b16 %v659, %v657
          %v758 = vpack.c.b16 %v660, %v658
          %v759 = vpack.c.b16 %v663, %v661
          %v760 = vpack.c.b16 %v664, %v662
          %v761 = vpack.c.b16 %v667, %v665
          %v762 = vpack.c.b16 %v668, %v666
          %v763 = vpack.c.b16 %v671, %v669
          %v764 = vpack.c.b16 %v672, %v670
          %v765 = vpack.c.b16 %v675, %v673
          %v766 = vpack.c.b16 %v676, %v674
          %v767 = vpack.c.b16 %v679, %v677
          %v768 = vpack.c.b16 %v680, %v678
          %v769 = vpack.c.b16 %v683, %v681
          %v770 = vpack.c.b16 %v684, %v682
          %v771 = vpack.c.b16 %v687, %v685
          %v772 = vpack.c.b16 %v688, %v686
          %v773 = vpack.c.b16 %v691, %v689
          %v774 = vpack.c.b16 %v692, %v690
          %v775 = vpack.c.b16 %v695, %v693
          %v776 = vpack.c.b16 %v696, %v694
          %v777 = vpack.c.b16 %v699, %v697
          %v778 = vpack.c.b16 %v700, %v698
          %v779 = vpack.c.b16 %v703, %v701
          %v780 = vpack.c.b16 %v704, %v702
          %v781 = vpack.c.b16 %v707, %v705
          %v782 = vpack.c.b16 %v708, %v706
          %v783 = vpack.c.b16 %v711, %v709
          %v784 = vpack.c.b16 %v712, %v710
          %v785 = vpack.c.b16 %v715, %v713
          %v786 = vpack.c.b16 %v716, %v714
          %v787 = vpack.c.b16 %v719, %v717
          %v788 = vpack.c.b16 %v720, %v718
          %v789 = vpack.c.b16 %v723, %v721
          %v790 = vpack.c.b16 %v724, %v722
          %v791 = vpack.c.b16 %v727, %v725
          %v792 = vpack.c.b16 %v728, %v726
          %v858 = vlaneseq
          %v859 = vshrl.u32 %v858, 7
          %v860 = vsub.s32 0, %v859
          %v861 = vrot.slane %v536, %v860
          %v862 = vlaneseq
          %v863 = vshrl.u32 %v862, 7
          %v864 = vsub.s32 1, %v863
          %v865 = vrot.slane %v536, %v864
          %868 = vmatprep.subr.bf16.mxu0 %v730
          %869 = vmatpush1.bf16.msra.mxu0 %v729
          %870 = vmatprep.subr.bf16.mxu0 %v732
          %871 = vmatpush1.bf16.msra.mxu0 %v731
          %872 = vmatprep.subr.bf16.mxu0 %v734
          %873 = vmatpush1.bf16.msra.mxu0 %v733
          %874 = vmatprep.subr.bf16.mxu0 %v736
          %875 = vmatpush1.bf16.msra.mxu0 %v735
          %876 = vmatprep.subr.bf16.mxu0 %v738
          %877 = vmatpush1.bf16.msra.mxu0 %v737
          %878 = vmatprep.subr.bf16.mxu0 %v740
          %879 = vmatpush1.bf16.msra.mxu0 %v739
          %880 = vmatprep.subr.bf16.mxu0 %v742
          %881 = vmatpush1.bf16.msra.mxu0 %v741
          %882 = vmatprep.subr.bf16.mxu0 %v744
          %883 = vmatpush1.bf16.msra.mxu0 %v743
          %884 = vmatprep.subr.bf16.mxu0 %v746
          %885 = vmatpush1.bf16.msra.mxu0 %v745
          %886 = vmatprep.subr.bf16.mxu0 %v748
          %887 = vmatpush1.bf16.msra.mxu0 %v747
          %888 = vmatprep.subr.bf16.mxu0 %v750
          %889 = vmatpush1.bf16.msra.mxu0 %v749
          %890 = vmatprep.subr.bf16.mxu0 %v752
          %891 = vmatpush1.bf16.msra.mxu0 %v751
          %892 = vmatprep.subr.bf16.mxu0 %v754
          %893 = vmatpush1.bf16.msra.mxu0 %v753
          %894 = vmatprep.subr.bf16.mxu0 %v756
          %895 = vmatpush1.bf16.msra.mxu0 %v755
          %896 = vmatprep.subr.bf16.mxu0 %v758
          %897 = vmatpush1.bf16.msra.mxu0 %v757
          %898 = vmatprep.subr.bf16.mxu0 %v760
          %899 = vmatpush1.bf16.msra.mxu0 %v759
          %900 = vmatprep.mubr.bf16.mxu0 %v469
          %901 = vmatmul.mubr.bf16.gmra.mrb[0].mxu0 %v468
          %v902 = vpop.f32.mrb[0].mxu0
          %v903 = vadd.f32 %v861, %v902
          %v904 = vpop.f32.mrb[0].mxu0
          %v905 = vadd.f32 %v865, %v904
          %v906 = vpop.f32.mrb[0].mxu0
          %v907 = vpop.f32.mrb[0].mxu0
          %908 = vdwg.mxu0
          %909 = vmatprep.subr.bf16.mxu0 %v762
          %910 = vmatpush1.bf16.msra.mxu0 %v761
          %911 = vmatprep.subr.bf16.mxu0 %v764
          %912 = vmatpush1.bf16.msra.mxu0 %v763
          %913 = vmatprep.subr.bf16.mxu0 %v766
          %914 = vmatpush1.bf16.msra.mxu0 %v765
          %915 = vmatprep.subr.bf16.mxu0 %v768
          %916 = vmatpush1.bf16.msra.mxu0 %v767
          %917 = vmatprep.subr.bf16.mxu0 %v770
          %918 = vmatpush1.bf16.msra.mxu0 %v769
          %919 = vmatprep.subr.bf16.mxu0 %v772
          %920 = vmatpush1.bf16.msra.mxu0 %v771
          %921 = vmatprep.subr.bf16.mxu0 %v774
          %922 = vmatpush1.bf16.msra.mxu0 %v773
          %923 = vmatprep.subr.bf16.mxu0 %v776
          %924 = vmatpush1.bf16.msra.mxu0 %v775
          %925 = vmatprep.subr.bf16.mxu0 %v778
          %926 = vmatpush1.bf16.msra.mxu0 %v777
          %927 = vmatprep.subr.bf16.mxu0 %v780
          %928 = vmatpush1.bf16.msra.mxu0 %v779
          %929 = vmatprep.subr.bf16.mxu0 %v782
          %930 = vmatpush1.bf16.msra.mxu0 %v781
          %931 = vmatprep.subr.bf16.mxu0 %v784
          %932 = vmatpush1.bf16.msra.mxu0 %v783
          %933 = vmatprep.subr.bf16.mxu0 %v786
          %934 = vmatpush1.bf16.msra.mxu0 %v785
          %935 = vmatprep.subr.bf16.mxu0 %v788
          %936 = vmatpush1.bf16.msra.mxu0 %v787
          %937 = vmatprep.subr.bf16.mxu0 %v790
          %938 = vmatpush1.bf16.msra.mxu0 %v789
          %939 = vmatprep.subr.bf16.mxu0 %v792
          %940 = vmatpush1.bf16.msra.mxu0 %v791
          %941 = vmatprep.mubr.bf16.mxu0 %v471
          %942 = vmatmul.mubr.bf16.gmra.mrb[0].mxu0 %v470
          %v943 = vpop.f32.mrb[0].mxu0
          %v944 = vadd.f32 %v903, %v943
          %v945 = vpop.f32.mrb[0].mxu0
          %v946 = vadd.f32 %v905, %v945
          %v947 = vpop.f32.mrb[0].mxu0
          %v948 = vpop.f32.mrb[0].mxu0
          %949 = vdwg.mxu0
          %v952 = vcombine.low %v944, %v946
          %v954 = vunpack.c.l.s4 1966171168
          %v955 = vunpack.c.0.s8 %v954
          %v956 = vlaneseq
          %v957 = vshrl.u32 %v956, 7
          %v958 = vsub.s32 %v955, %v957
          %v959 = vrot.slane %v952, %v958
          %v961 = vunpack.c.l.s4 1966171168
          %v962 = vunpack.c.0.s8 %v961
          %v963 = vlaneseq
          %v964 = vshrl.u32 %v963, 7
          %v965 = vsub.s32 %v962, %v964
          %v966 = vrot.slane %v959, %v965
          %vm968 = vcmp.lt.s32.totalorder %v437, 256
          %vm969 = vmand %vm438, %vm968
          %970 = vst.msk [vmem:[%s220] sm:$0x3] %vm969, %v966
        $region48: #{tpu_custom_call.1} parent=31 // pred_fallthru
          _
        %s971 = sand.u32 %s111, 1
        %s972 = scalar_lea.sflag [#allocation5], %s971
        %s973 = sand.u32 %s111, 1
        %s974 = smul.addr %s973, 2
        %s975 = scalar_lea.vmem [#allocation8], %s974
        // Predicated region
        $region49: #{tpu_custom_call.1} parent=31 // pred_check
          %p976 = pneg %p121
        $region50: #{tpu_custom_call.1} parent=31 // pred_check_branch
          %978 = sbr.rel (%p976) target = $region52
        $region51: #{tpu_custom_call.1} parent=31 // pred_region
          %s980 = ssub.s32 32, 32
          %981 = vsyncadd %s972, %s980
          %s982 = smul.addr %s25, 2
          %s983 = smul.addr %s982, 16
          %s984 = scalar_lea.hbm %s3, %s983
          %s986 = sshll.u32 %s975, 4
          %s987 = int_to_ptr.vmem [resolvable:$true] %s986
          %989 = dma.vmem_to_hbm [thread:$0]  %s987, 32, %s984, %s972
        $region52: #{tpu_custom_call.1} parent=31 // pred_fallthru
          _
      $region32: #{tpu_custom_call.1} parent=5 // pred_fallthru
        _
      %p990 = scmp.le.s32.totalorder 2, %s16
      // Predicated region
      $region53: #{tpu_custom_call.1} parent=5 // pred_check
        %p991 = pneg %p990
      $region54: #{tpu_custom_call.1} parent=5 // pred_check_branch
        %993 = sbr.rel (%p991) target = $region56
      $region55: #{tpu_custom_call.1} parent=5 // pred_region
        %s994 = ssub.s32 %s16, 2
        // Predicated region
        $region57: #{tpu_custom_call.1} parent=55 // pred_check
          %p995 = pneg %p127
        $region58: #{tpu_custom_call.1} parent=55 // pred_check_branch
          %997 = sbr.rel (%p995) target = $region60
        $region59: #{tpu_custom_call.1} parent=55 // pred_region
          %s998 = sand.u32 %s112, 1
          %s999 = scalar_lea.sflag [#allocation5], %s998
          %s1000 = sand.u32 %s112, 1
          %s1001 = smul.addr %s1000, 2
          %s1002 = scalar_lea.vmem [#allocation8], %s1001
          %1003 = dma.done %s999, 32
        $region60: #{tpu_custom_call.1} parent=55 // pred_fallthru
          _
      $region56: #{tpu_custom_call.1} parent=5 // pred_fallthru
        _
    $region6: #{tpu_custom_call.1} parent=1 // loop_footer
      %s20 = sadd.s32 1, %s16
    $region7: #{tpu_custom_call.1} parent=1 // loop_footer_branch
      %15 = sbr.rel target = $region3
    $region8: #{tpu_custom_call.1} parent=1 // loop_exit
      _
    %1004 = vsyncpa [#allocation4], 1
    %s1005 = scalar_lea.sflag [#allocation4], 1
    %1006 = vsyncpa %s1005, 1
    %1007 = vsyncpa [#allocation7], 1
    %1008 = vsyncpa [#allocation5], 1
    %s1009 = scalar_lea.sflag [#allocation5], 1
    %1010 = vsyncpa %s1009, 1

</llo_original>
